<compile_context>
chip_gen: v7x
topology: tpu7x:2x2x1
jax: 0.10.0
libtpu: 0.0.40
codegen_flags: <defaults>
</compile_context>

<pallas_src>
import functools

import jax
import jax.numpy as jnp
import numpy as np
from jax.experimental import pallas as pl
from jax.experimental.pallas import tpu as pltpu

LANE = 128
CHUNK_ROWS = 1024                 # compute chunk: f32 intermediates ~0.5 MiB each
BLOCK_BYTES = 4 * 1024 * 1024     # DMA block target per input (per grid step)
MAX_CORES = 2                     # v7x has 2 TCs; extra axis is harmless on v5e/v6e
VMEM_LIMIT = 32 * 1024 * 1024


def _round_up(x, m):
    return (x + m - 1) // m * m


def _cdiv(a, b):
    return (a + b - 1) // b


def _tversky_partial_kernel(p_ref, g_ref, spg_ref, sp_ref, sg_ref, *,
                            rows, block_rows, chunk, steps, needs_mask):
    """Accumulates per-core, per-lane partial sums of p*g, p and g."""
    c = pl.program_id(0)          # parallel (core) axis
    s = pl.program_id(1)          # arbitrary (reduction) axis

    @pl.when(s == 0)
    def _init():
        spg_ref[...] = jnp.zeros_like(spg_ref)
        sp_ref[...] = jnp.zeros_like(sp_ref)
        sg_ref[...] = jnp.zeros_like(sg_ref)

    n_chunks = block_rows // chunk

    def _accumulate(rows_left):
        # rows_left is None on the fast path (block fully in range) and a
        # traced scalar on the masked path (partial / overflow block).
        def body(j, carry):
            acc_pg, acc_p, acc_g = carry
            off = pl.multiple_of(j * chunk, chunk)
            pf = p_ref[pl.ds(off, chunk), :].astype(jnp.float32)
            gf = g_ref[pl.ds(off, chunk), :].astype(jnp.float32)
            if rows_left is not None:
                rid = jax.lax.broadcasted_iota(jnp.int32, (chunk, LANE), 0)
                keep = (rid + j * chunk) < rows_left
                pf = jnp.where(keep, pf, 0.0)
                gf = jnp.where(keep, gf, 0.0)
            acc_pg = acc_pg + jnp.sum(pf * gf, axis=0, keepdims=True)
            acc_p = acc_p + jnp.sum(pf, axis=0, keepdims=True)
            acc_g = acc_g + jnp.sum(gf, axis=0, keepdims=True)
            return acc_pg, acc_p, acc_g

        zero = jnp.zeros((1, LANE), jnp.float32)
        acc_pg, acc_p, acc_g = jax.lax.fori_loop(
            0, n_chunks, body, (zero, zero, zero))
        spg_ref[0:1, :] += acc_pg
        sp_ref[0:1, :] += acc_p
        sg_ref[0:1, :] += acc_g

    if needs_mask:
        blk = c * steps + s                       # virtual (unclamped) block id
        block_start = blk * block_rows

        @pl.when(block_start + block_rows <= rows)
        def _full_block():                        # hot path: no mask work
            _accumulate(None)

        @pl.when(block_start + block_rows > rows)
        def _tail_block():                        # runs for at most one block/core
            _accumulate(rows - block_start)
    else:
        _accumulate(None)


def tversky_loss(y_pred, y_true, num_c, alpha=0.5, beta=0.5):
    assert y_pred.shape == y_true.shape
    total = int(np.prod(y_pred.shape))

    # Feed native dtypes straight to the kernel (no wrapper astype -> no extra
    # HBM pass); the kernel upcasts to f32 right before the multiply.
    p = jnp.reshape(y_pred, (-1,))
    g = jnp.reshape(y_true, (-1,))

    rows = _cdiv(total, LANE)
    padded = rows * LANE
    if padded != total:
        # Zero padding is exact for all three sums (padded p = g = 0).
        # TODO(synk): this pad is an extra HBM copy when total % 128 != 0;
        #             avoiding it requires a 1-D flat-element-masked layout.
        p = jnp.pad(p, (0, padded - total))
        g = jnp.pad(g, (0, padded - total))

    p2 = p.reshape(rows, LANE)
    g2 = g.reshape(rows, LANE)

    # ~4 MiB DMA block per input, rounded to a CHUNK multiple (CHUNK_ROWS is a
    # multiple of 32 so the block rows satisfy f32/bf16/int8 sublane packing).
    max_itemsize = max(p2.dtype.itemsize, g2.dtype.itemsize)
    cap = max(CHUNK_ROWS,
              (BLOCK_BYTES // (LANE * max_itemsize)) // CHUNK_ROWS * CHUNK_ROWS)
    chunk = min(CHUNK_ROWS, rows)
    block_rows = min(cap, _round_up(rows, chunk))   # == rows (full dim) if small

    n_blk = _cdiv(rows, block_rows)
    ncores = min(MAX_CORES, n_blk)
    steps = _cdiv(n_blk, ncores)
    needs_mask = (rows % block_rows != 0) or (ncores * steps != n_blk)

    if ncores * steps == n_blk:
        in_idx = lambda c, s: (c * steps + s, 0)
    else:
        # Overflow iterations of the last core re-read the last real block;
        # their contribution is fully masked out in the kernel.
        in_idx = lambda c, s: (jnp.minimum(c * steps + s, n_blk - 1), 0)
    out_idx = lambda c, s: (c, 0)

    kernel = functools.partial(
        _tversky_partial_kernel, rows=rows, block_rows=block_rows, chunk=chunk,
        steps=steps, needs_mask=needs_mask)

    # Per-core partial sums: row 0 of each core's (8,128) slab is used; the
    # rest stays zero.  (8,128) blocks keep the output lane/sublane aligned.
    part_shape = jax.ShapeDtypeStruct((ncores * 8, LANE), jnp.float32)
    part_spec = pl.BlockSpec((8, LANE), out_idx)

    spg, sp, sg = pl.pallas_call(
        kernel,
        out_shape=(part_shape, part_shape, part_shape),
        grid_spec=pltpu.PrefetchScalarGridSpec(
            num_scalar_prefetch=0,
            grid=(ncores, steps),
            in_specs=[pl.BlockSpec((block_rows, LANE), in_idx),
                      pl.BlockSpec((block_rows, LANE), in_idx)],
            out_specs=[part_spec, part_spec, part_spec],
        ),
        compiler_params=pltpu.CompilerParams(
            dimension_semantics=("parallel", "arbitrary"),
            vmem_limit_bytes=VMEM_LIMIT),
        cost_estimate=pl.CostEstimate(
            flops=4 * total,
            transcendentals=0,
            bytes_accessed=total * (p2.dtype.itemsize + g2.dtype.itemsize)
            + 3 * ncores * 8 * LANE * 4),
    )(p2, g2)

    # Tiny cross-lane / cross-core reduce + Tversky formula in the wrapper.
    s_pg = jnp.sum(spg)                      # sum(p0*g0)
    s_p = jnp.sum(sp)                        # sum(p0)
    s_g = jnp.sum(sg)                        # sum(g0)
    # sum(p0*g1) = sum(p) - sum(p*g) ; sum(p1*g0) = sum(g) - sum(p*g)
    den = s_pg + alpha * (s_p - s_pg) + beta * (s_g - s_pg)
    return jnp.asarray(num_c, jnp.float32) - s_pg / den


def _tversky_loss_ref(y_pred, y_true, num_c, alpha=0.5, beta=0.5):
    p0 = y_pred.astype(jnp.float32)
    g0 = y_true.astype(jnp.float32)
    p1 = 1.0 - p0
    g1 = 1.0 - g0
    num = jnp.sum(p0 * g0)
    den = num + alpha * jnp.sum(p0 * g1) + beta * jnp.sum(p1 * g0)
    return float(num_c) - num / den


if __name__ == "__main__":
    num_c = 4
    shape = (2, num_c, 16, 16)          # NCHW, like the PyTorch module

    key = jax.random.PRNGKey(0)
    k1, k2 = jax.random.split(key)

    # Soft predictions over channels (bf16), one-hot ground truth (int8):
    # the kernel streams the native dtypes and upcasts in VMEM.
    y_pred = jax.nn.softmax(
        jax.random.normal(k1, shape, jnp.float32), axis=1).astype(jnp.bfloat16)
    labels = jax.random.randint(k2, (shape[0], shape[2], shape[3]), 0, num_c)
    y_true = jnp.transpose(
        jax.nn.one_hot(labels, num_c, dtype=jnp.int8), (0, 3, 1, 2))

    out = tversky_loss(y_pred, y_true, num_c)
    out = jax.block_until_ready(out)

    ref = _tversky_loss_ref(y_pred, y_true, num_c)
    np.testing.assert_allclose(np.asarray(out), np.asarray(ref),
                               rtol=1e-5, atol=1e-5)

    print("KERNEL_OK")
</pallas_src>

<mosaic_0001>
module attributes {stable_mosaic.version = 11 : i64} {
  func.func @_tversky_partial_kernel(%arg0: i32, %arg1: i32, %arg2: memref<16x128xbf16, #tpu.memory_space<vmem>>, %arg3: memref<16x128xi8, #tpu.memory_space<vmem>>, %arg4: memref<8x128xf32, #tpu.memory_space<vmem>>, %arg5: memref<8x128xf32, #tpu.memory_space<vmem>>, %arg6: memref<8x128xf32, #tpu.memory_space<vmem>>) attributes {dimension_semantics = [#tpu.dimension_semantics<parallel>, #tpu.dimension_semantics<arbitrary>], iteration_bounds = array<i64: 1, 1>, scalar_prefetch = 0 : i64, scratch_operands = 0 : i64, tpu.core_type = #tpu.core_type<tc>, window_params = [{transform_indices = @transform_0, window_bounds = array<i64: 16, 128>}, {transform_indices = @transform_1, window_bounds = array<i64: 16, 128>}, {transform_indices = @transform_2, window_bounds = array<i64: 8, 128>}, {transform_indices = @transform_3, window_bounds = array<i64: 8, 128>}, {transform_indices = @transform_4, window_bounds = array<i64: 8, 128>}]} {
    %c0_i32 = arith.constant 0 : i32
    %0 = arith.cmpi eq, %arg1, %c0_i32 : i32
    %1 = arith.extui %0 : i1 to i32
    %c0_i32_0 = arith.constant 0 : i32
    %2 = arith.cmpi ne, %1, %c0_i32_0 : i32
    scf.if %2 {
      %cst_18 = arith.constant 0.000000e+00 : f32
      %31 = vector.broadcast %cst_18 : f32 to vector<8x128xf32>
      %c0_19 = arith.constant 0 : index
      %c0_20 = arith.constant 0 : index
      %32 = vector.load %arg4[%c0_19, %c0_20] : memref<8x128xf32, #tpu.memory_space<vmem>>, vector<8x128xf32>
      tpu.vector_store %arg4[%c0_19, %c0_20], %31 {strides = array<i32>} : memref<8x128xf32, #tpu.memory_space<vmem>>, vector<8x128xf32>,
      %cst_21 = arith.constant 0.000000e+00 : f32
      %33 = vector.broadcast %cst_21 : f32 to vector<8x128xf32>
      %c0_22 = arith.constant 0 : index
      %c0_23 = arith.constant 0 : index
      %34 = vector.load %arg5[%c0_22, %c0_23] : memref<8x128xf32, #tpu.memory_space<vmem>>, vector<8x128xf32>
      tpu.vector_store %arg5[%c0_22, %c0_23], %33 {strides = array<i32>} : memref<8x128xf32, #tpu.memory_space<vmem>>, vector<8x128xf32>,
      %cst_24 = arith.constant 0.000000e+00 : f32
      %35 = vector.broadcast %cst_24 : f32 to vector<8x128xf32>
      %c0_25 = arith.constant 0 : index
      %c0_26 = arith.constant 0 : index
      %36 = vector.load %arg6[%c0_25, %c0_26] : memref<8x128xf32, #tpu.memory_space<vmem>>, vector<8x128xf32>
      tpu.vector_store %arg6[%c0_25, %c0_26], %35 {strides = array<i32>} : memref<8x128xf32, #tpu.memory_space<vmem>>, vector<8x128xf32>,
    } else {
    }
    %cst = arith.constant 0.000000e+00 : f32
    %3 = vector.broadcast %cst : f32 to vector<1x128xf32>
    %c0_i32_1 = arith.constant 0 : i32
    %c16_i32 = arith.constant 16 : i32
    %4 = arith.muli %c0_i32_1, %c16_i32 : i32
    %5 = tpu.assume_multiple %4, 16 : i32
    %6 = arith.index_cast %5 : i32 to index
    %c0 = arith.constant 0 : index
    %7 = vector.load %arg2[%6, %c0] : memref<16x128xbf16, #tpu.memory_space<vmem>>, vector<16x128xbf16>
    %8 = arith.extf %7 : vector<16x128xbf16> to vector<16x128xf32>
    %9 = arith.index_cast %5 : i32 to index
    %c0_2 = arith.constant 0 : index
    %10 = vector.load %arg3[%9, %c0_2] : memref<16x128xi8, #tpu.memory_space<vmem>>, vector<16x128xi8>
    %11 = arith.sitofp %10 : vector<16x128xi8> to vector<16x128xf32>
    %12 = arith.mulf %8, %11 : vector<16x128xf32>
    %cst_3 = arith.constant dense<0.000000e+00> : vector<128xf32>
    %13 = vector.multi_reduction <add>, %12, %cst_3 [0] : vector<16x128xf32> to vector<128xf32>
    %14 = vector.shape_cast %13 : vector<128xf32> to vector<1x128xf32>
    %15 = arith.addf %3, %14 : vector<1x128xf32>
    %cst_4 = arith.constant dense<0.000000e+00> : vector<128xf32>
    %16 = vector.multi_reduction <add>, %8, %cst_4 [0] : vector<16x128xf32> to vector<128xf32>
    %17 = vector.shape_cast %16 : vector<128xf32> to vector<1x128xf32>
    %18 = arith.addf %3, %17 : vector<1x128xf32>
    %cst_5 = arith.constant dense<0.000000e+00> : vector<128xf32>
    %19 = vector.multi_reduction <add>, %11, %cst_5 [0] : vector<16x128xf32> to vector<128xf32>
    %20 = vector.shape_cast %19 : vector<128xf32> to vector<1x128xf32>
    %21 = arith.addf %3, %20 : vector<1x128xf32>
    %c1_i32 = arith.constant 1 : i32
    %c0_6 = arith.constant 0 : index
    %c0_7 = arith.constant 0 : index
    %22 = vector.load %arg4[%c0_6, %c0_7] : memref<8x128xf32, #tpu.memory_space<vmem>>, vector<1x128xf32>
    %23 = arith.addf %22, %15 : vector<1x128xf32>
    %c0_8 = arith.constant 0 : index
    %c0_9 = arith.constant 0 : index
    %24 = vector.load %arg4[%c0_8, %c0_9] : memref<8x128xf32, #tpu.memory_space<vmem>>, vector<1x128xf32>
    tpu.vector_store %arg4[%c0_8, %c0_9], %23 {strides = array<i32>} : memref<8x128xf32, #tpu.memory_space<vmem>>, vector<1x128xf32>,
    %c0_10 = arith.constant 0 : index
    %c0_11 = arith.constant 0 : index
    %25 = vector.load %arg5[%c0_10, %c0_11] : memref<8x128xf32, #tpu.memory_space<vmem>>, vector<1x128xf32>
    %26 = arith.addf %25, %18 : vector<1x128xf32>
    %c0_12 = arith.constant 0 : index
    %c0_13 = arith.constant 0 : index
    %27 = vector.load %arg5[%c0_12, %c0_13] : memref<8x128xf32, #tpu.memory_space<vmem>>, vector<1x128xf32>
    tpu.vector_store %arg5[%c0_12, %c0_13], %26 {strides = array<i32>} : memref<8x128xf32, #tpu.memory_space<vmem>>, vector<1x128xf32>,
    %c0_14 = arith.constant 0 : index
    %c0_15 = arith.constant 0 : index
    %28 = vector.load %arg6[%c0_14, %c0_15] : memref<8x128xf32, #tpu.memory_space<vmem>>, vector<1x128xf32>
    %29 = arith.addf %28, %21 : vector<1x128xf32>
    %c0_16 = arith.constant 0 : index
    %c0_17 = arith.constant 0 : index
    %30 = vector.load %arg6[%c0_16, %c0_17] : memref<8x128xf32, #tpu.memory_space<vmem>>, vector<1x128xf32>
    tpu.vector_store %arg6[%c0_16, %c0_17], %29 {strides = array<i32>} : memref<8x128xf32, #tpu.memory_space<vmem>>, vector<1x128xf32>,
    return
  }
  func.func @transform_0(%arg0: i32, %arg1: i32) -> (i32, i32) {
    %c1_i32 = arith.constant 1 : i32
    %0 = arith.muli %arg0, %c1_i32 : i32
    %1 = arith.addi %0, %arg1 : i32
    %c0_i32 = arith.constant 0 : i32
    %c0_i32_0 = arith.constant 0 : i32
    return %1, %c0_i32 : i32, i32
  }
  func.func @transform_1(%arg0: i32, %arg1: i32) -> (i32, i32) {
    %c1_i32 = arith.constant 1 : i32
    %0 = arith.muli %arg0, %c1_i32 : i32
    %1 = arith.addi %0, %arg1 : i32
    %c0_i32 = arith.constant 0 : i32
    %c0_i32_0 = arith.constant 0 : i32
    return %1, %c0_i32 : i32, i32
  }
  func.func @transform_2(%arg0: i32, %arg1: i32) -> (i32, i32) {
    %c0_i32 = arith.constant 0 : i32
    %c0_i32_0 = arith.constant 0 : i32
    return %arg0, %c0_i32 : i32, i32
  }
  func.func @transform_3(%arg0: i32, %arg1: i32) -> (i32, i32) {
    %c0_i32 = arith.constant 0 : i32
    %c0_i32_0 = arith.constant 0 : i32
    return %arg0, %c0_i32 : i32, i32
  }
  func.func @transform_4(%arg0: i32, %arg1: i32) -> (i32, i32) {
    %c0_i32 = arith.constant 0 : i32
    %c0_i32_0 = arith.constant 0 : i32
    return %arg0, %c0_i32 : i32, i32
  }
}

</mosaic_0001>

<llo_original>
// kernel: tpu_custom_call.1
$region0: #{tpu_custom_call.1}
  #allocation0 [shape = 'u32[]', space=smem, size = 0x4, offset = 0x4, fixed_abs, tag = 'smem constant byte address 0x4 - core index']
  #allocation1 [shape = 'u32[144,128]{1,0:T(1,128)}', space=vmem, size = 0x12000, scoped, tag = 'internal scratch']
  %s0 = inlined_call_operand.hbm [shape: bf16[16,128], index: 0, kind: input, shape index: {}]
  %s1 = inlined_call_operand.hbm [shape: s8[16,128], index: 1, kind: input, shape index: {}]
  %s2 = inlined_call_operand.hbm [shape: f32[8,128], index: 2, kind: output, shape index: {0}]
  %s3 = inlined_call_operand.hbm [shape: f32[8,128], index: 3, kind: output, shape index: {1}]
  %s4 = inlined_call_operand.hbm [shape: f32[8,128], index: 4, kind: output, shape index: {2}]
  %5 = xla_tuple %s2, %s3, %s4
  %s6 = sld [smem:[#allocation0]]
  $region46: #{tpu_custom_call.1} parent=0
    _
  %s8 = ssub.s32 1, %s6
  %s9 = scalar_select 0, %s8, %s6
  $region1: #{tpu_custom_call.1} parent=0
    #allocation2 [shape = 'u8[4096]{0}', space=vmem, size = 0x1000, scoped, tag = 'input window, operand 0, single buffered']
    #allocation3 [shape = 's32[1]{0}', space=sflag, size = 0x4, scoped, tag = 'scoped memory for tpu_custom_call.1']
    #allocation4 [shape = 's32[1]{0}', space=sflag, size = 0x4, scoped, tag = 'scoped memory for tpu_custom_call.1']
    #allocation5 [shape = 'u8[2048]{0}', space=vmem, size = 0x800, scoped, tag = 'input window, operand 1, single buffered']
    #allocation6 [shape = 's32[1]{0}', space=sflag, size = 0x4, scoped, tag = 'scoped memory for tpu_custom_call.1']
    #allocation7 [shape = 'u8[4096]{0}', space=vmem, size = 0x1000, scoped, tag = 'output window, operand 0, single buffered']
    #allocation8 [shape = 'u8[4096]{0}', space=vmem, size = 0x1000, scoped, tag = 'output window, operand 1, single buffered']
    #allocation9 [shape = 's32[1]{0}', space=sflag, size = 0x4, scoped, tag = 'scoped memory for tpu_custom_call.1']
    #allocation10 [shape = 'u8[4096]{0}', space=vmem, size = 0x1000, scoped, tag = 'output window, operand 2, single buffered']
    %10 = vsyncpa [#allocation3], 0
    %11 = vsyncpa [#allocation6], 0
    %12 = vsyncpa [#allocation4], 0
    %13 = vsyncpa [#allocation9], 0
    // Predicated region
    $region2: #{tpu_custom_call.1} parent=1 // pred_check
      _
    $region3: #{tpu_custom_call.1} parent=1 // pred_check_branch
      %15 = sbr.rel (0) target = $region5
    $region4: #{tpu_custom_call.1} parent=1 // pred_region
      %s16 = sadd.s32 0, 0
      %s17 = smul.u32 2, %s16
      %s19 = ssub.s32 128, 128
      %20 = vsyncadd [#allocation3], %s19
      %s21 = smul.addr %s17, 64
      %s22 = scalar_lea.hbm %s0, %s21
      %s23 = sshll.u32 [#allocation2], 4
      %s24 = int_to_ptr.vmem [resolvable:$true] %s23
      %29 = dma.hbm_to_vmem [thread:$0]  %s22, 128, %s24, [#allocation3], 64, 64, 4
    $region5: #{tpu_custom_call.1} parent=1 // pred_fallthru
      _
    // Predicated region
    $region6: #{tpu_custom_call.1} parent=1 // pred_check
      _
    $region7: #{tpu_custom_call.1} parent=1 // pred_check_branch
      %31 = sbr.rel (0) target = $region9
    $region8: #{tpu_custom_call.1} parent=1 // pred_region
      %s32 = sadd.s32 0, 0
      %s33 = smul.u32 2, %s32
      %s35 = ssub.s32 64, 64
      %36 = vsyncadd [#allocation6], %s35
      %s37 = smul.addr %s33, 32
      %s38 = scalar_lea.hbm %s1, %s37
      %s39 = sshll.u32 [#allocation5], 4
      %s40 = int_to_ptr.vmem [resolvable:$true] %s39
      %45 = dma.hbm_to_vmem [thread:$0]  %s38, 64, %s40, [#allocation6], 32, 32, 2
    $region9: #{tpu_custom_call.1} parent=1 // pred_fallthru
      _
    // Predicated region
    $region10: #{tpu_custom_call.1} parent=1 // pred_check
      _
    $region11: #{tpu_custom_call.1} parent=1 // pred_check_branch
      %47 = sbr.rel (0) target = $region13
    $region12: #{tpu_custom_call.1} parent=1 // pred_region
      %48 = dma.done [#allocation3], 128
    $region13: #{tpu_custom_call.1} parent=1 // pred_fallthru
      _
    // Predicated region
    $region14: #{tpu_custom_call.1} parent=1 // pred_check
      _
    $region15: #{tpu_custom_call.1} parent=1 // pred_check_branch
      %50 = sbr.rel (0) target = $region17
    $region16: #{tpu_custom_call.1} parent=1 // pred_region
      %51 = dma.done [#allocation6], 64
    $region17: #{tpu_custom_call.1} parent=1 // pred_fallthru
      _
    %s52 = sadd.s32 0, 0
    %s53 = smul.u32 2, %s52
    %s54 = sadd.s32 0, 0
    %s55 = smul.u32 2, %s54
    %p56 = scmp.eq.s32.totalorder 0, 0
    // Predicated region
    $region18: #{tpu_custom_call.1} parent=1 // pred_check
      %p57 = pneg %p56
    $region19: #{tpu_custom_call.1} parent=1 // pred_check_branch
      %59 = sbr.rel (%p57) target = $region21
    $region20: #{tpu_custom_call.1} parent=1 // pred_region
      %60 = vst [vmem:[#allocation7] sm:$0xff] 0.0
      %61 = vst [vmem:[#allocation8] sm:$0xff] 0.0
      %62 = vst [vmem:[#allocation10] sm:$0xff] 0.0
    $region21: #{tpu_custom_call.1} parent=1 // pred_fallthru
      _
    %v63 = vld [vmem:[#allocation2] sm:$0xf]
    %v64 = vld [vmem:[#allocation2 + $0x4] sm:$0xf]
    %v65 = vunpack.c.l.bf16 %v63
    %v66 = vunpack.c.l.bf16 %v64
    %v67 = vld [vmem:[#allocation5] sm:$0x3]
    %v68 = vld [vmem:[#allocation5 + $0x2] sm:$0x3]
    %v69 = vunpack.c.0.s8 %v67
    %v70 = vunpack.c.0.s8 %v68
    %v71 = vcvt.s32.f32 %v69
    %v72 = vcvt.s32.f32 %v70
    %v73 = vmul.f32 %v65, %v71
    %v74 = vmul.f32 %v66, %v72
    %v75 = vadd.f32 %v73, %v74
    %v76 = vrot.slane %v75, 4
    %v77 = vadd.f32 %v75, %v76
    %v78 = vrot.slane %v77, 2
    %v79 = vadd.f32 %v77, %v78
    %v80 = vrot.slane %v79, 1
    %v81 = vadd.f32 %v79, %v80
    %v82 = vadd.f32 %v81, 0.0
    %v83 = vadd.f32 %v65, %v66
    %v84 = vrot.slane %v83, 4
    %v85 = vadd.f32 %v83, %v84
    %v86 = vrot.slane %v85, 2
    %v87 = vadd.f32 %v85, %v86
    %v88 = vrot.slane %v87, 1
    %v89 = vadd.f32 %v87, %v88
    %v90 = vadd.f32 %v89, 0.0
    %v91 = vadd.f32 %v71, %v72
    %v92 = vrot.slane %v91, 4
    %v93 = vadd.f32 %v91, %v92
    %v94 = vrot.slane %v93, 2
    %v95 = vadd.f32 %v93, %v94
    %v96 = vrot.slane %v95, 1
    %v97 = vadd.f32 %v95, %v96
    %v98 = vadd.f32 %v97, 0.0
    %v99 = vld [vmem:[#allocation7] sm:$0x1]
    %v100 = vadd.f32 %v99, %v82
    %101 = vst [vmem:[#allocation7] sm:$0x1] %v100
    %v102 = vld [vmem:[#allocation8] sm:$0x1]
    %v103 = vadd.f32 %v102, %v90
    %104 = vst [vmem:[#allocation8] sm:$0x1] %v103
    %v105 = vld [vmem:[#allocation10] sm:$0x1]
    %v106 = vadd.f32 %v105, %v98
    %107 = vst [vmem:[#allocation10] sm:$0x1] %v106
    // Predicated region
    $region22: #{tpu_custom_call.1} parent=1 // pred_check
      _
    $region23: #{tpu_custom_call.1} parent=1 // pred_check_branch
      %109 = sbr.rel (0) target = $region25
    $region24: #{tpu_custom_call.1} parent=1 // pred_region
      %s111 = ssub.s32 128, 128
      %112 = vsyncadd [#allocation4], %s111
      %s114 = sshll.u32 [#allocation7], 4
      %s115 = int_to_ptr.vmem [resolvable:$true] %s114
      %117 = dma.vmem_to_hbm [thread:$0]  %s115, 128, %s2, [#allocation4]
    $region25: #{tpu_custom_call.1} parent=1 // pred_fallthru
      _
    // Predicated region
    $region26: #{tpu_custom_call.1} parent=1 // pred_check
      _
    $region27: #{tpu_custom_call.1} parent=1 // pred_check_branch
      %119 = sbr.rel (0) target = $region29
    $region28: #{tpu_custom_call.1} parent=1 // pred_region
      %s121 = ssub.s32 128, 128
      %122 = vsyncadd [#allocation9], %s121
      %s124 = sshll.u32 [#allocation8], 4
      %s125 = int_to_ptr.vmem [resolvable:$true] %s124
      %127 = dma.vmem_to_hbm [thread:$0]  %s125, 128, %s3, [#allocation9]
    $region29: #{tpu_custom_call.1} parent=1 // pred_fallthru
      _
    // Predicated region
    $region30: #{tpu_custom_call.1} parent=1 // pred_check
      _
    $region31: #{tpu_custom_call.1} parent=1 // pred_check_branch
      %129 = sbr.rel (0) target = $region33
    $region32: #{tpu_custom_call.1} parent=1 // pred_region
      %s131 = ssub.s32 128, 128
      %132 = vsyncadd [#allocation9], %s131
      %s134 = sshll.u32 [#allocation10], 4
      %s135 = int_to_ptr.vmem [resolvable:$true] %s134
      %137 = dma.vmem_to_hbm [thread:$0]  %s135, 128, %s4, [#allocation9]
    $region33: #{tpu_custom_call.1} parent=1 // pred_fallthru
      _
    // Predicated region
    $region34: #{tpu_custom_call.1} parent=1 // pred_check
      _
    $region35: #{tpu_custom_call.1} parent=1 // pred_check_branch
      %139 = sbr.rel (0) target = $region37
    $region36: #{tpu_custom_call.1} parent=1 // pred_region
      %140 = dma.done [#allocation4], 128
    $region37: #{tpu_custom_call.1} parent=1 // pred_fallthru
      _
    // Predicated region
    $region38: #{tpu_custom_call.1} parent=1 // pred_check
      _
    $region39: #{tpu_custom_call.1} parent=1 // pred_check_branch
      %142 = sbr.rel (0) target = $region41
    $region40: #{tpu_custom_call.1} parent=1 // pred_region
      %143 = dma.done [#allocation9], 128
    $region41: #{tpu_custom_call.1} parent=1 // pred_fallthru
      _
    // Predicated region
    $region42: #{tpu_custom_call.1} parent=1 // pred_check
      _
    $region43: #{tpu_custom_call.1} parent=1 // pred_check_branch
      %145 = sbr.rel (0) target = $region45
    $region44: #{tpu_custom_call.1} parent=1 // pred_region
      %146 = dma.done [#allocation9], 128
    $region45: #{tpu_custom_call.1} parent=1 // pred_fallthru
      _
    %147 = vsyncpa [#allocation3], 1
    %148 = vsyncpa [#allocation6], 1
    %149 = vsyncpa [#allocation4], 1
    %150 = vsyncpa [#allocation9], 1

</llo_original>
